<compile_context>
chip_gen: v6e
topology: v6e:2x2x1
jax: 0.10.0
libtpu: 0.0.40
codegen_flags: <defaults>
</compile_context>

<pallas_src>
import functools
import math

import jax
import jax.numpy as jnp
from jax.experimental import pallas as pl
from jax.experimental.pallas import tpu as pltpu

_SUBLANE = 8


def _round_up(x, m):
    return (x + m - 1) // m * m


def _mlp_policy_kernel(n_hidden, precision, x_ref, *refs):
    """refs = (W0, b0, ..., W_{n_hidden-1}, b_{n_hidden-1}, W_out, b_out, mean_out)."""
    param_refs = refs[:-1]
    mean_ref = refs[-1]

    h = x_ref[...]                        # already in the MXU operand dtype: no cast
    for layer in range(n_hidden):         # static Python loop (small, fixed depth)
        w = param_refs[2 * layer][...]
        b = param_refs[2 * layer + 1][...]
        y = jnp.dot(h, w, preferred_element_type=jnp.float32, precision=precision)
        # bias-add / tanh in f32 (v5e-safe), then cast back for the next MXU op.
        h = jnp.tanh(y + b).astype(w.dtype)
    w_out = param_refs[2 * n_hidden][...]
    b_out = param_refs[2 * n_hidden + 1][...]
    mean = jnp.dot(h, w_out, preferred_element_type=jnp.float32,
                   precision=precision) + b_out
    mean_ref[...] = mean.astype(mean_ref.dtype)


def prepare_params(weights, biases, matmul_dtype=jnp.bfloat16):
    """One-time parameter prep (hoisted out of the per-call hot path):
    weights cast to the MXU operand dtype, biases kept f32 as (1, out)."""
    assert len(weights) == len(biases) and len(weights) >= 1
    flat = []
    for w, b in zip(weights, biases):
        flat.append(jnp.asarray(w, matmul_dtype))
        flat.append(jnp.asarray(b, jnp.float32).reshape(1, -1))
    return tuple(flat)


def mlp_policy_forward(x, params, logstd, *, block_b=1024, weight_buffers=None):
    """Returns (batch_mean [B, ac_dim], batch_scale_tril [B, ac_dim, ac_dim])."""
    assert len(params) >= 2 and len(params) % 2 == 0
    n_hidden = len(params) // 2 - 1
    batch, ob_dim = x.shape
    ac_dim = params[-1].shape[-1]
    matmul_dtype = params[0].dtype

    # ---- batch tiling: dtype-aware sublane alignment, >= 2 grid steps when
    #      possible so v7x's second TensorCore gets work ----
    align = max(_SUBLANE, 32 // jnp.dtype(matmul_dtype).itemsize)  # 8 f32 / 16 bf16
    block_b = max(align, _round_up(block_b, align))
    b_aligned = _round_up(batch, align)
    tb = min(block_b, b_aligned)
    if b_aligned > align and b_aligned // tb < 2:
        tb = _round_up(-(-b_aligned // 2), align)
    b_pad = _round_up(b_aligned, tb)
    grid = (b_pad // tb,)

    # Cast x once to the MXU operand dtype; only the *batch* dim is padded
    # (no lane-padded HBM copy of x).  Padded rows just compute tanh(bias)
    # on zeros and are sliced off below -- do not "optimize" the slice away.
    x_in = x.astype(matmul_dtype)
    if b_pad != batch:
        x_in = jnp.pad(x_in, ((0, b_pad - batch), (0, 0)))

    # ---- BlockSpecs ----
    in_specs = [pl.BlockSpec((tb, ob_dim), lambda i: (i, 0))]
    for p in params:
        if weight_buffers is None:
            # Full-array block, constant index map -> stays VMEM-resident
            # across batch tiles (no re-DMA).
            spec = pl.BlockSpec(p.shape, lambda i: (0, 0))
        else:
            # e.g. weight_buffers=1 on v7x (64 MiB VMEM): single-buffer the
            # constant-index weight blocks to halve their VMEM footprint.
            spec = pl.BlockSpec(p.shape, lambda i: (0, 0),
                                pipeline_mode=pl.Buffered(weight_buffers))
        in_specs.append(spec)
    out_specs = pl.BlockSpec((tb, ac_dim), lambda i: (i, 0))
    out_shape = jax.ShapeDtypeStruct((b_pad, ac_dim), jnp.float32)

    # ---- explicit VMEM budget ----
    bufs = 2 if weight_buffers is None else max(1, weight_buffers)
    param_bytes = sum(int(p.size) * p.dtype.itemsize for p in params)
    block_bytes = tb * ob_dim * jnp.dtype(matmul_dtype).itemsize + tb * ac_dim * 4
    vmem_limit = int(min(max(2 * (2 * block_bytes + bufs * param_bytes),
                             16 * 2**20), 60 * 2**20))

    precision = (jax.lax.Precision.HIGHEST
                 if matmul_dtype == jnp.float32 else None)
    kernel = functools.partial(_mlp_policy_kernel, n_hidden, precision)

    mean_pad = pl.pallas_call(
        kernel,
        grid=grid,
        in_specs=in_specs,
        out_specs=out_specs,
        out_shape=out_shape,
        compiler_params=pltpu.CompilerParams(
            dimension_semantics=("parallel",),   # batch tiles -> both TCs on v7x
            vmem_limit_bytes=vmem_limit),
    )(x_in, *params)

    batch_mean = mean_pad if b_pad == batch else mean_pad[:batch]

    # batch_scale_tril: tiny (ac_dim, ac_dim) diagonal, B-times-redundant
    # broadcast -> trivial XLA op outside the kernel.
    scale_tril = jnp.diag(jnp.exp(logstd.astype(jnp.float32)))
    batch_scale_tril = jnp.broadcast_to(scale_tril[None], (batch, ac_dim, ac_dim))
    return batch_mean, batch_scale_tril


def build_mlp_params(key, ob_dim, ac_dim, n_layers, size):
    """Deterministic PyTorch-Linear-style init: U(-1/sqrt(fan_in), 1/sqrt(fan_in))."""
    dims = [ob_dim] + [size] * n_layers + [ac_dim]
    weights, biases = [], []
    for fan_in, fan_out in zip(dims[:-1], dims[1:]):
        key, kw, kb = jax.random.split(key, 3)
        bound = 1.0 / math.sqrt(fan_in)
        weights.append(jax.random.uniform(
            kw, (fan_in, fan_out), jnp.float32, -bound, bound))
        biases.append(jax.random.uniform(
            kb, (fan_out,), jnp.float32, -bound, bound))
    return weights, biases


if __name__ == "__main__":
    # Small shapes consistent with MLPPolicy(ac_dim, ob_dim, n_layers, size)
    batch, ob_dim, ac_dim, n_layers, size = 8, 16, 8, 2, 32

    key = jax.random.PRNGKey(0)
    key, k_obs = jax.random.split(key)
    x = jax.random.normal(k_obs, (batch, ob_dim), jnp.float32)

    weights, biases = build_mlp_params(key, ob_dim, ac_dim, n_layers, size)
    logstd = jnp.zeros((ac_dim,), jnp.float32)   # nn.Parameter(torch.zeros(ac_dim))

    def ref_forward(xx):
        h = xx
        for w, b in zip(weights[:-1], biases[:-1]):
            h = jnp.tanh(jnp.dot(h, w, precision=jax.lax.Precision.HIGHEST) + b)
        mean = jnp.dot(h, weights[-1],
                       precision=jax.lax.Precision.HIGHEST) + biases[-1]
        scale = jnp.broadcast_to(jnp.diag(jnp.exp(logstd))[None],
                                 (xx.shape[0], ac_dim, ac_dim))
        return mean, scale

    # --- default bf16 MXU-operand path (f32 accumulation), small batch ---
    params_bf16 = prepare_params(weights, biases, jnp.bfloat16)
    mean1, tril1 = mlp_policy_forward(x, params_bf16, logstd)
    jax.block_until_ready((mean1, tril1))
    ref_mean, ref_tril = ref_forward(x)
    assert mean1.shape == (batch, ac_dim)
    assert tril1.shape == (batch, ac_dim, ac_dim)
    assert jnp.allclose(mean1, ref_mean, atol=5e-2, rtol=5e-2)
    assert jnp.allclose(tril1, ref_tril, atol=1e-6)

    # --- f32 path (Precision.HIGHEST), explicit small block_b -> multi-tile grid ---
    key, k2 = jax.random.split(key)
    x2 = jax.random.normal(k2, (24, ob_dim), jnp.float32)
    params_f32 = prepare_params(weights, biases, jnp.float32)
    mean2, tril2 = mlp_policy_forward(x2, params_f32, logstd, block_b=8)
    jax.block_until_ready((mean2, tril2))
    ref2_mean, ref2_tril = ref_forward(x2)
    assert jnp.allclose(mean2, ref2_mean, atol=1e-5, rtol=1e-5)
    assert jnp.allclose(tril2, ref2_tril, atol=1e-6)

    # --- default tiling path: ragged batch, auto-split into >=2 grid steps
    #     (v7x dual-TC) + batch padding / final slice exercised ---
    key, k3 = jax.random.split(key)
    x3 = jax.random.normal(k3, (200, ob_dim), jnp.float32)
    mean3, _ = mlp_policy_forward(x3, params_bf16, logstd)
    jax.block_until_ready(mean3)
    ref3_mean, _ = ref_forward(x3)
    assert mean3.shape == (200, ac_dim)
    assert jnp.allclose(mean3, ref3_mean, atol=5e-2, rtol=5e-2)

    # TODO(synk): the MultivariateNormal distribution object and .sample() have
    # no Pallas equivalent; the kernel returns its parameters (mean, scale_tril).
    print("KERNEL_OK")
</pallas_src>

<mosaic_0001>
module attributes {stable_mosaic.version = 11 : i64} {
  func.func @_mlp_policy_kernel(%arg0: i32, %arg1: memref<16x16xbf16, #tpu.memory_space<vmem>>, %arg2: memref<16x32xbf16, #tpu.memory_space<vmem>>, %arg3: memref<1x32xf32, #tpu.memory_space<vmem>>, %arg4: memref<32x32xbf16, #tpu.memory_space<vmem>>, %arg5: memref<1x32xf32, #tpu.memory_space<vmem>>, %arg6: memref<32x8xbf16, #tpu.memory_space<vmem>>, %arg7: memref<1x8xf32, #tpu.memory_space<vmem>>, %arg8: memref<16x8xf32, #tpu.memory_space<vmem>>) attributes {dimension_semantics = [#tpu.dimension_semantics<parallel>], iteration_bounds = array<i64: 1>, scalar_prefetch = 0 : i64, scratch_operands = 0 : i64, tpu.core_type = #tpu.core_type<tc>, window_params = [{transform_indices = @transform_0, window_bounds = array<i64: 16, 16>}, {pipeline_mode = #tpu.pipeline_mode<synchronous>, transform_indices = @transform_1, window_bounds = array<i64: 16, 32>}, {pipeline_mode = #tpu.pipeline_mode<synchronous>, transform_indices = @transform_2, window_bounds = array<i64: 1, 32>}, {pipeline_mode = #tpu.pipeline_mode<synchronous>, transform_indices = @transform_3, window_bounds = array<i64: 32, 32>}, {pipeline_mode = #tpu.pipeline_mode<synchronous>, transform_indices = @transform_4, window_bounds = array<i64: 1, 32>}, {pipeline_mode = #tpu.pipeline_mode<synchronous>, transform_indices = @transform_5, window_bounds = array<i64: 32, 8>}, {pipeline_mode = #tpu.pipeline_mode<synchronous>, transform_indices = @transform_6, window_bounds = array<i64: 1, 8>}, {transform_indices = @transform_7, window_bounds = array<i64: 16, 8>}]} {
    %c0 = arith.constant 0 : index
    %c0_0 = arith.constant 0 : index
    %0 = vector.load %arg1[%c0, %c0_0] : memref<16x16xbf16, #tpu.memory_space<vmem>>, vector<16x16xbf16>
    %c0_1 = arith.constant 0 : index
    %c0_2 = arith.constant 0 : index
    %1 = vector.load %arg2[%c0_1, %c0_2] : memref<16x32xbf16, #tpu.memory_space<vmem>>, vector<16x32xbf16>
    %c0_3 = arith.constant 0 : index
    %c0_4 = arith.constant 0 : index
    %2 = vector.load %arg3[%c0_3, %c0_4] : memref<1x32xf32, #tpu.memory_space<vmem>>, vector<1x32xf32>
    %cst = arith.constant dense<0.000000e+00> : vector<16x32xf32>
    %3 = tpu.matmul %0, %1, %cst {dimension_numbers = #tpu.dot_dimension_numbers<[1], [0], [0], [1], [0, 0, 1, 1], [], []>} : vector<16x16xbf16>, vector<16x32xbf16>, vector<16x32xf32> -> vector<16x32xf32>
    %4 = vector.broadcast %2 : vector<1x32xf32> to vector<16x32xf32>
    %5 = arith.addf %3, %4 : vector<16x32xf32>
    %6 = math.tanh %5 : vector<16x32xf32>
    %7 = arith.truncf %6 : vector<16x32xf32> to vector<16x32xbf16>
    %c0_5 = arith.constant 0 : index
    %c0_6 = arith.constant 0 : index
    %8 = vector.load %arg4[%c0_5, %c0_6] : memref<32x32xbf16, #tpu.memory_space<vmem>>, vector<32x32xbf16>
    %c0_7 = arith.constant 0 : index
    %c0_8 = arith.constant 0 : index
    %9 = vector.load %arg5[%c0_7, %c0_8] : memref<1x32xf32, #tpu.memory_space<vmem>>, vector<1x32xf32>
    %cst_9 = arith.constant dense<0.000000e+00> : vector<16x32xf32>
    %10 = tpu.matmul %7, %8, %cst_9 {dimension_numbers = #tpu.dot_dimension_numbers<[1], [0], [0], [1], [0, 0, 1, 1], [], []>} : vector<16x32xbf16>, vector<32x32xbf16>, vector<16x32xf32> -> vector<16x32xf32>
    %11 = vector.broadcast %9 : vector<1x32xf32> to vector<16x32xf32>
    %12 = arith.addf %10, %11 : vector<16x32xf32>
    %13 = math.tanh %12 : vector<16x32xf32>
    %14 = arith.truncf %13 : vector<16x32xf32> to vector<16x32xbf16>
    %c0_10 = arith.constant 0 : index
    %c0_11 = arith.constant 0 : index
    %15 = vector.load %arg6[%c0_10, %c0_11] : memref<32x8xbf16, #tpu.memory_space<vmem>>, vector<32x8xbf16>
    %c0_12 = arith.constant 0 : index
    %c0_13 = arith.constant 0 : index
    %16 = vector.load %arg7[%c0_12, %c0_13] : memref<1x8xf32, #tpu.memory_space<vmem>>, vector<1x8xf32>
    %cst_14 = arith.constant dense<0.000000e+00> : vector<16x8xf32>
    %17 = tpu.matmul %14, %15, %cst_14 {dimension_numbers = #tpu.dot_dimension_numbers<[1], [0], [0], [1], [0, 0, 1, 1], [], []>} : vector<16x32xbf16>, vector<32x8xbf16>, vector<16x8xf32> -> vector<16x8xf32>
    %18 = vector.broadcast %16 : vector<1x8xf32> to vector<16x8xf32>
    %19 = arith.addf %17, %18 : vector<16x8xf32>
    %c0_15 = arith.constant 0 : index
    %c0_16 = arith.constant 0 : index
    %20 = vector.load %arg8[%c0_15, %c0_16] : memref<16x8xf32, #tpu.memory_space<vmem>>, vector<16x8xf32>
    tpu.vector_store %arg8[%c0_15, %c0_16], %19 {strides = array<i32>} : memref<16x8xf32, #tpu.memory_space<vmem>>, vector<16x8xf32>,
    return
  }
  func.func @transform_0(%arg0: i32) -> (i32, i32) {
    %c0_i32 = arith.constant 0 : i32
    %c0_i32_0 = arith.constant 0 : i32
    return %arg0, %c0_i32 : i32, i32
  }
  func.func @transform_1(%arg0: i32) -> (i32, i32) {
    %c0_i32 = arith.constant 0 : i32
    %c0_i32_0 = arith.constant 0 : i32
    %c0_i32_1 = arith.constant 0 : i32
    return %c0_i32, %c0_i32_0 : i32, i32
  }
  func.func @transform_2(%arg0: i32) -> (i32, i32) {
    %c0_i32 = arith.constant 0 : i32
    %c0_i32_0 = arith.constant 0 : i32
    %c0_i32_1 = arith.constant 0 : i32
    return %c0_i32, %c0_i32_0 : i32, i32
  }
  func.func @transform_3(%arg0: i32) -> (i32, i32) {
    %c0_i32 = arith.constant 0 : i32
    %c0_i32_0 = arith.constant 0 : i32
    %c0_i32_1 = arith.constant 0 : i32
    return %c0_i32, %c0_i32_0 : i32, i32
  }
  func.func @transform_4(%arg0: i32) -> (i32, i32) {
    %c0_i32 = arith.constant 0 : i32
    %c0_i32_0 = arith.constant 0 : i32
    %c0_i32_1 = arith.constant 0 : i32
    return %c0_i32, %c0_i32_0 : i32, i32
  }
  func.func @transform_5(%arg0: i32) -> (i32, i32) {
    %c0_i32 = arith.constant 0 : i32
    %c0_i32_0 = arith.constant 0 : i32
    %c0_i32_1 = arith.constant 0 : i32
    return %c0_i32, %c0_i32_0 : i32, i32
  }
  func.func @transform_6(%arg0: i32) -> (i32, i32) {
    %c0_i32 = arith.constant 0 : i32
    %c0_i32_0 = arith.constant 0 : i32
    %c0_i32_1 = arith.constant 0 : i32
    return %c0_i32, %c0_i32_0 : i32, i32
  }
  func.func @transform_7(%arg0: i32) -> (i32, i32) {
    %c0_i32 = arith.constant 0 : i32
    %c0_i32_0 = arith.constant 0 : i32
    return %arg0, %c0_i32 : i32, i32
  }
}

</mosaic_0001>

<llo_original>
// kernel: tpu_custom_call.1
$region0: #{tpu_custom_call.1}
  #allocation0 [shape = 'u32[]', space=smem, size = 0x4, offset = 0x4, fixed_abs, tag = 'smem constant byte address 0x4 - core index']
  #allocation1 [shape = 'u32[144,128]{1,0:T(1,128)}', space=vmem, size = 0x12000, scoped, tag = 'internal scratch']
  %s0 = inlined_call_operand.vmem [shape: bf16[16,16], index: 0, kind: input, shape index: {}]
  %s1 = inlined_call_operand.hbm [shape: bf16[16,32], index: 1, kind: input, shape index: {}]
  %s2 = inlined_call_operand.vmem [shape: f32[1,32], index: 2, kind: input, shape index: {}]
  %s3 = inlined_call_operand.vmem [shape: bf16[32,32], index: 3, kind: input, shape index: {}]
  %s4 = inlined_call_operand.hbm [shape: f32[1,32], index: 4, kind: input, shape index: {}]
  %s5 = inlined_call_operand.vmem [shape: bf16[32,8], index: 5, kind: input, shape index: {}]
  %s6 = inlined_call_operand.vmem [shape: f32[1,8], index: 6, kind: input, shape index: {}]
  %s7 = inlined_call_operand.vmem [shape: f32[16,8], index: 7, kind: output, shape index: {}]
  %s8 = sld [smem:[#allocation0]]
  $region46: #{tpu_custom_call.1} parent=0
    _
  %s10 = ssub.s32 1, %s8
  %s11 = scalar_select 0, %s10, %s8
  $region1: #{tpu_custom_call.1} parent=0
    #allocation2 [shape = 'u8[4096]{0}', space=vmem, size = 0x1000, scoped, tag = 'input window, operand 1, single buffered']
    #allocation3 [shape = 's32[1]{0}', space=sflag, size = 0x4, scoped, tag = 'scoped memory for tpu_custom_call.1']
    #allocation4 [shape = 'u8[512]{0}', space=vmem, size = 0x400, scoped, tag = 'input window, operand 4, single buffered']
    #allocation5 [shape = 's32[1]{0}', space=sflag, size = 0x4, scoped, tag = 'scoped memory for tpu_custom_call.1']
    %12 = vsyncpa [#allocation3], 0
    %13 = vsyncpa [#allocation5], 0
    // Predicated region
    $region2: #{tpu_custom_call.1} parent=1 // pred_check
      _
    $region3: #{tpu_custom_call.1} parent=1 // pred_check_branch
      %15 = sbr.rel (0) target = $region5
    $region4: #{tpu_custom_call.1} parent=1 // pred_region
      _
    $region5: #{tpu_custom_call.1} parent=1 // pred_fallthru
      _
    // Predicated region
    $region6: #{tpu_custom_call.1} parent=1 // pred_check
      _
    $region7: #{tpu_custom_call.1} parent=1 // pred_check_branch
      %17 = sbr.rel (0) target = $region9
    $region8: #{tpu_custom_call.1} parent=1 // pred_region
      %s19 = ssub.s32 128, 128
      %20 = vsyncadd [#allocation3], %s19
      %s21 = sshll.u32 [#allocation2], 4
      %s22 = int_to_ptr.vmem [resolvable:$true] %s21
      %27 = dma.hbm_to_vmem [thread:$0]  %s1, 128, %s22, [#allocation3], 64, 64, 4
    $region9: #{tpu_custom_call.1} parent=1 // pred_fallthru
      _
    // Predicated region
    $region10: #{tpu_custom_call.1} parent=1 // pred_check
      _
    $region11: #{tpu_custom_call.1} parent=1 // pred_check_branch
      %29 = sbr.rel (0) target = $region13
    $region12: #{tpu_custom_call.1} parent=1 // pred_region
      _
    $region13: #{tpu_custom_call.1} parent=1 // pred_fallthru
      _
    // Predicated region
    $region14: #{tpu_custom_call.1} parent=1 // pred_check
      _
    $region15: #{tpu_custom_call.1} parent=1 // pred_check_branch
      %31 = sbr.rel (0) target = $region17
    $region16: #{tpu_custom_call.1} parent=1 // pred_region
      _
    $region17: #{tpu_custom_call.1} parent=1 // pred_fallthru
      _
    // Predicated region
    $region18: #{tpu_custom_call.1} parent=1 // pred_check
      _
    $region19: #{tpu_custom_call.1} parent=1 // pred_check_branch
      %33 = sbr.rel (0) target = $region21
    $region20: #{tpu_custom_call.1} parent=1 // pred_region
      %s35 = ssub.s32 16, 16
      %36 = vsyncadd [#allocation5], %s35
      %s38 = sshll.u32 [#allocation4], 4
      %s39 = int_to_ptr.vmem [resolvable:$true] %s38
      %41 = dma.hbm_to_vmem [thread:$0]  %s4, 16, %s39, [#allocation5]
    $region21: #{tpu_custom_call.1} parent=1 // pred_fallthru
      _
    // Predicated region
    $region22: #{tpu_custom_call.1} parent=1 // pred_check
      _
    $region23: #{tpu_custom_call.1} parent=1 // pred_check_branch
      %43 = sbr.rel (0) target = $region25
    $region24: #{tpu_custom_call.1} parent=1 // pred_region
      _
    $region25: #{tpu_custom_call.1} parent=1 // pred_fallthru
      _
    // Predicated region
    $region26: #{tpu_custom_call.1} parent=1 // pred_check
      _
    $region27: #{tpu_custom_call.1} parent=1 // pred_check_branch
      %45 = sbr.rel (0) target = $region29
    $region28: #{tpu_custom_call.1} parent=1 // pred_region
      _
    $region29: #{tpu_custom_call.1} parent=1 // pred_fallthru
      _
    // Predicated region
    $region30: #{tpu_custom_call.1} parent=1 // pred_check
      _
    $region31: #{tpu_custom_call.1} parent=1 // pred_check_branch
      %47 = sbr.rel (0) target = $region33
    $region32: #{tpu_custom_call.1} parent=1 // pred_region
      %48 = dma.done [#allocation3], 128
    $region33: #{tpu_custom_call.1} parent=1 // pred_fallthru
      _
    // Predicated region
    $region34: #{tpu_custom_call.1} parent=1 // pred_check
      _
    $region35: #{tpu_custom_call.1} parent=1 // pred_check_branch
      %50 = sbr.rel (0) target = $region37
    $region36: #{tpu_custom_call.1} parent=1 // pred_region
      %51 = dma.done [#allocation5], 16
    $region37: #{tpu_custom_call.1} parent=1 // pred_fallthru
      _
    %v53 = vld [vmem:[%s0] sm:$0xf]
    %v54 = vld [vmem:[%s0 + $0x4] sm:$0xf]
    %v55 = vld [vmem:[#allocation2] sm:$0xf]
    %v56 = vld [vmem:[#allocation2 + $0x4] sm:$0xf]
    %v57 = vld [vmem:[%s2] sm:$0x1]
    %v59 = vlaneseq
    %v60 = vshrl.u32 %v59, 7
    %v61 = vsub.s32 0, %v60
    %v62 = vrot.slane %v57, %v61
    %v66 = vunpack.c.l.b16 %v53
    %v67 = vunpack.c.l.b16 %v54
    %v68 = vpack.c.b16 %v67, %v66
    %v71 = vunpack.c.l.b16 %v55
    %v72 = vunpack.c.l.b16 %v56
    %v73 = vpack.c.b16 %v72, %v71
    %vm75 = vcmask 130048
    %v77 = vsel %vm75, %v68, 0
    %79 = vmatprep.subr.bf16.mxu0 0
    %80 = vmatpush1.bf16.msra.mxu0 0
    %81 = vmatprep.subr.bf16.mxu0 0
    %82 = vmatpush1.bf16.msra.mxu0 0
    %83 = vmatprep.subr.bf16.mxu0 0
    %84 = vmatpush1.bf16.msra.mxu0 0
    %85 = vmatprep.subr.bf16.mxu0 0
    %86 = vmatpush1.bf16.msra.mxu0 0
    %87 = vmatprep.subr.bf16.mxu0 0
    %88 = vmatpush1.bf16.msra.mxu0 0
    %89 = vmatprep.subr.bf16.mxu0 0
    %90 = vmatpush1.bf16.msra.mxu0 0
    %91 = vmatprep.subr.bf16.mxu0 0
    %92 = vmatpush1.bf16.msra.mxu0 0
    %93 = vmatprep.subr.bf16.mxu0 0
    %94 = vmatpush1.bf16.msra.mxu0 %v73
    %95 = vmatprep.subr.bf16.mxu0 0
    %96 = vmatpush2.bf16.msra.mxu0 0
    %97 = vmatprep.subr.bf16.mxu0 0
    %98 = vmatpush2.bf16.msra.mxu0 0
    %99 = vmatprep.subr.bf16.mxu0 0
    %100 = vmatpush2.bf16.msra.mxu0 0
    %101 = vmatprep.subr.bf16.mxu0 0
    %102 = vmatpush2.bf16.msra.mxu0 0
    %103 = vmatprep.subr.bf16.mxu0 0
    %104 = vmatpush2.bf16.msra.mxu0 0
    %105 = vmatprep.subr.bf16.mxu0 0
    %106 = vmatpush2.bf16.msra.mxu0 0
    %107 = vmatprep.subr.bf16.mxu0 0
    %108 = vmatpush2.bf16.msra.mxu0 0
    %109 = vmatprep.subr.bf16.mxu0 0
    %110 = vmatpush2.bf16.msra.mxu0 0
    %111 = vmatprep.mubr.bf16.mxu0 0
    %112 = vmatmul.mubr.bf16.gmra.mxu0 %v77
    %v113 = vpop.f32.mrf.mxu0
    %v114 = vadd.f32 %v62, %v113
    %v115 = vpop.f32.mrf.mxu0
    %v116 = vpop.f32.mrf.mxu0
    %v117 = vadd.f32 %v62, %v116
    %v118 = vpop.f32.mrf.mxu0
    %119 = vdwg.mxu0
    %v120 = vtanh.pop %v114
    %v121 = vtanh.pop %v117
    %v122 = vpack.c.bf16 %v121, %v120
    %v123 = vld [vmem:[%s3] sm:$0xf]
    %v124 = vld [vmem:[%s3 + $0x4] sm:$0xf]
    %v125 = vld [vmem:[%s3 + $0x8] sm:$0xf]
    %v126 = vld [vmem:[%s3 + $0xc] sm:$0xf]
    %v127 = vld [vmem:[#allocation4] sm:$0x1]
    %v129 = vlaneseq
    %v130 = vshrl.u32 %v129, 7
    %v131 = vsub.s32 0, %v130
    %v132 = vrot.slane %v127, %v131
    %v138 = vunpack.c.l.b16 %v123
    %v139 = vunpack.c.l.b16 %v124
    %v140 = vunpack.c.l.b16 %v125
    %v141 = vunpack.c.l.b16 %v126
    %v142 = vpack.c.b16 %v139, %v138
    %v143 = vpack.c.b16 %v141, %v140
    %vm146 = vcmask 261120
    %v148 = vsel %vm146, %v122, 0
    %150 = vmatprep.subr.bf16.mxu0 0
    %151 = vmatpush1.bf16.msra.mxu0 0
    %152 = vmatprep.subr.bf16.mxu0 0
    %153 = vmatpush1.bf16.msra.mxu0 0
    %154 = vmatprep.subr.bf16.mxu0 0
    %155 = vmatpush1.bf16.msra.mxu0 0
    %156 = vmatprep.subr.bf16.mxu0 0
    %157 = vmatpush1.bf16.msra.mxu0 0
    %158 = vmatprep.subr.bf16.mxu0 0
    %159 = vmatpush1.bf16.msra.mxu0 0
    %160 = vmatprep.subr.bf16.mxu0 0
    %161 = vmatpush1.bf16.msra.mxu0 0
    %162 = vmatprep.subr.bf16.mxu0 0
    %163 = vmatpush1.bf16.msra.mxu0 %v143
    %164 = vmatprep.subr.bf16.mxu0 0
    %165 = vmatpush1.bf16.msra.mxu0 %v142
    %166 = vmatprep.subr.bf16.mxu0 0
    %167 = vmatpush2.bf16.msra.mxu0 0
    %168 = vmatprep.subr.bf16.mxu0 0
    %169 = vmatpush2.bf16.msra.mxu0 0
    %170 = vmatprep.subr.bf16.mxu0 0
    %171 = vmatpush2.bf16.msra.mxu0 0
    %172 = vmatprep.subr.bf16.mxu0 0
    %173 = vmatpush2.bf16.msra.mxu0 0
    %174 = vmatprep.subr.bf16.mxu0 0
    %175 = vmatpush2.bf16.msra.mxu0 0
    %176 = vmatprep.subr.bf16.mxu0 0
    %177 = vmatpush2.bf16.msra.mxu0 0
    %178 = vmatprep.subr.bf16.mxu0 0
    %179 = vmatpush2.bf16.msra.mxu0 0
    %180 = vmatprep.subr.bf16.mxu0 0
    %181 = vmatpush2.bf16.msra.mxu0 0
    %182 = vmatprep.mubr.bf16.mxu0 0
    %183 = vmatmul.mubr.bf16.gmra.mxu0 %v148
    %v184 = vpop.f32.mrf.mxu0
    %v185 = vadd.f32 %v132, %v184
    %v186 = vpop.f32.mrf.mxu0
    %v187 = vpop.f32.mrf.mxu0
    %v188 = vadd.f32 %v132, %v187
    %v189 = vpop.f32.mrf.mxu0
    %190 = vdwg.mxu0
    %v191 = vtanh.pop %v185
    %v192 = vtanh.pop %v188
    %v193 = vpack.c.bf16 %v192, %v191
    %v194 = vld [vmem:[%s5] sm:$0xf]
    %v195 = vld [vmem:[%s5 + $0x4] sm:$0xf]
    %v196 = vld [vmem:[%s5 + $0x8] sm:$0xf]
    %v197 = vld [vmem:[%s5 + $0xc] sm:$0xf]
    %v198 = vld [vmem:[%s6] sm:$0x1]
    %v200 = vlaneseq
    %v201 = vshrl.u32 %v200, 7
    %v202 = vsub.s32 0, %v201
    %v203 = vrot.slane %v198, %v202
    %v209 = vunpack.c.l.b16 %v194
    %v210 = vunpack.c.l.b16 %v195
    %v211 = vunpack.c.l.b16 %v196
    %v212 = vunpack.c.l.b16 %v197
    %v213 = vpack.c.b16 %v210, %v209
    %v214 = vpack.c.b16 %v212, %v211
    %v218 = vsel %vm146, %v193, 0
    %220 = vmatprep.subr.bf16.mxu0 0
    %221 = vmatpush1.bf16.msra.mxu0 0
    %222 = vmatprep.subr.bf16.mxu0 0
    %223 = vmatpush1.bf16.msra.mxu0 0
    %224 = vmatprep.subr.bf16.mxu0 0
    %225 = vmatpush1.bf16.msra.mxu0 0
    %226 = vmatprep.subr.bf16.mxu0 0
    %227 = vmatpush1.bf16.msra.mxu0 0
    %228 = vmatprep.subr.bf16.mxu0 0
    %229 = vmatpush1.bf16.msra.mxu0 0
    %230 = vmatprep.subr.bf16.mxu0 0
    %231 = vmatpush1.bf16.msra.mxu0 0
    %232 = vmatprep.subr.bf16.mxu0 0
    %233 = vmatpush1.bf16.msra.mxu0 %v214
    %234 = vmatprep.subr.bf16.mxu0 0
    %235 = vmatpush1.bf16.msra.mxu0 %v213
    %236 = vmatprep.subr.bf16.mxu0 0
    %237 = vmatpush2.bf16.msra.mxu0 0
    %238 = vmatprep.subr.bf16.mxu0 0
    %239 = vmatpush2.bf16.msra.mxu0 0
    %240 = vmatprep.subr.bf16.mxu0 0
    %241 = vmatpush2.bf16.msra.mxu0 0
    %242 = vmatprep.subr.bf16.mxu0 0
    %243 = vmatpush2.bf16.msra.mxu0 0
    %244 = vmatprep.subr.bf16.mxu0 0
    %245 = vmatpush2.bf16.msra.mxu0 0
    %246 = vmatprep.subr.bf16.mxu0 0
    %247 = vmatpush2.bf16.msra.mxu0 0
    %248 = vmatprep.subr.bf16.mxu0 0
    %249 = vmatpush2.bf16.msra.mxu0 0
    %250 = vmatprep.subr.bf16.mxu0 0
    %251 = vmatpush2.bf16.msra.mxu0 0
    %252 = vmatprep.mubr.bf16.mxu0 0
    %253 = vmatmul.mubr.bf16.gmra.mxu0 %v218
    %v254 = vpop.f32.mrf.mxu0
    %v255 = vadd.f32 %v203, %v254
    %v256 = vpop.f32.mrf.mxu0
    %v257 = vpop.f32.mrf.mxu0
    %v258 = vadd.f32 %v203, %v257
    %v259 = vpop.f32.mrf.mxu0
    %260 = vdwg.mxu0
    %vm261 = vcmask 64512
    %262 = vst.msk [vmem:[%s7] sm:$0xff] %vm261, %v255
    %263 = vst.msk [vmem:[%s7 + $0x8] sm:$0xff] %vm261, %v258
    // Predicated region
    $region38: #{tpu_custom_call.1} parent=1 // pred_check
      _
    $region39: #{tpu_custom_call.1} parent=1 // pred_check_branch
      %265 = sbr.rel (0) target = $region41
    $region40: #{tpu_custom_call.1} parent=1 // pred_region
      _
    $region41: #{tpu_custom_call.1} parent=1 // pred_fallthru
      _
    // Predicated region
    $region42: #{tpu_custom_call.1} parent=1 // pred_check
      _
    $region43: #{tpu_custom_call.1} parent=1 // pred_check_branch
      %267 = sbr.rel (0) target = $region45
    $region44: #{tpu_custom_call.1} parent=1 // pred_region
      _
    $region45: #{tpu_custom_call.1} parent=1 // pred_fallthru
      _
    %268 = vsyncpa [#allocation3], 1
    %269 = vsyncpa [#allocation5], 1

</llo_original>
